<compile_context>
chip_gen: v5e
topology: v5e:2x2
jax: 0.10.0
libtpu: 0.0.40
codegen_flags: <defaults>
</compile_context>

<pallas_src>
import functools

import jax
import jax.numpy as jnp
from jax.experimental import pallas as pl
from jax.experimental.pallas import tpu as pltpu


def _dsconv_kernel(x_ref, kdw_ref, bdw_ref, wmask_ref, wpw_ref, bpw_ref,
                   o_ref, xp_ref, *, W, pad, C, Co):
    # x_ref    : (nb*C, H*W)        nb images, channels x flattened spatial
    # kdw_ref  : (nb*C, 9)          BN-folded depthwise taps (kh*3+kw order)
    # bdw_ref  : (nb*C, 1)          BN-folded depthwise bias
    # wmask_ref: (2, H*W)           lane masks: row 0 for kw=0, row 1 for kw=2
    # wpw_ref  : (Co, C)  bf16      BN-folded pointwise weights
    # bpw_ref  : (Co, 1)  f32       BN-folded pointwise bias
    # o_ref    : (nb*Co, H*W)
    # xp_ref   : (nb*C, H*W + 2*pad) VMEM scratch (zero-padded flat images)
    R, HW = x_ref.shape
    nb = R // C

    # Stage into a zero-padded flat scratch so every 3x3 tap is a static
    # lane-shifted slice; h-out-of-bounds reads land in the zero pad.
    # Pads are re-zeroed every step on purpose (see header note: scratch is
    # per-core under megacore sharding, and vst is not the binding slot here).
    xp_ref[:, :pad] = jnp.zeros((R, pad), jnp.float32)
    xp_ref[:, pad + HW:] = jnp.zeros((R, pad), jnp.float32)
    xp_ref[:, pad:pad + HW] = x_ref[...].astype(jnp.float32)

    # Depthwise 3x3, stride 1, same padding (BN scale folded into the taps).
    # Accumulator starts at the folded BN bias; kw-outer / kh-inner ordering
    # applies the w-edge mask once per kw column (exact reordering).
    acc = bdw_ref[...]                                        # (R,1), broadcasts
    for kw in range(3):
        partial = None
        for kh in range(3):
            s = (kh - 1) * W + (kw - 1)
            shifted = xp_ref[:, pad + s:pad + s + HW]         # (R, HW)
            tap = kdw_ref[:, kh * 3 + kw:kh * 3 + kw + 1]     # (R, 1) bcast
            term = shifted * tap
            partial = term if partial is None else partial + term
        if kw == 0:
            partial = partial * wmask_ref[0:1, :]             # kill w==0 wrap
        elif kw == 2:
            partial = partial * wmask_ref[1:2, :]             # kill w==W-1 wrap
        acc = acc + partial

    # ReLU6 (folded BN bias already in acc).
    y = jnp.clip(acc, 0.0, 6.0)                               # (R, HW) f32

    # Pointwise 1x1 conv (+ folded BN bias): one MXU matmul per image in the
    # block, bf16 operands, f32 accumulation.
    for b in range(nb):
        yb = y[b * C:(b + 1) * C, :].astype(jnp.bfloat16)
        ob = jnp.dot(wpw_ref[...], yb, preferred_element_type=jnp.float32)
        o_ref[b * Co:(b + 1) * Co, :] = (ob + bpw_ref[...]).astype(o_ref.dtype)


def _vmem_capacity_bytes():
    try:
        return int(pltpu.get_tpu_info().vmem_capacity_bytes)
    except Exception:
        return 64 * 1024 * 1024   # conservative fallback (v7x per-TC physical)


def _pick_images_per_step(N, C, Co, HW, pad, budget_bytes):
    """Largest nb dividing N whose per-step footprint fits `budget_bytes`,
    while keeping >= 2 parallel grid steps when N >= 2 (v7x has 2 TCs)."""
    const_bytes = 8 * (C * 10 + 2 * HW + Co * (C + 1))        # double-buffered consts
    best = 1
    for nb in range(1, N + 1):
        if N % nb:
            continue
        per_step = 4 * nb * (2 * C * HW + 2 * Co * HW + C * (HW + 2 * pad))
        if per_step + const_bytes > budget_bytes:
            continue
        if N >= 2 and N // nb < 2:
            continue
        best = nb
    return best


def dsconv_forward(x, dw_weight, bn1_gamma, bn1_beta, bn1_mean, bn1_var,
                   pw_weight, bn2_gamma, bn2_beta, bn2_mean, bn2_var,
                   eps=1e-5, images_per_step=None):
    """DSConv forward (eval mode).

    x         : (N, C, H, W)
    dw_weight : (C, 1, 3, 3)   PyTorch depthwise Conv2d weight
    pw_weight : (Co, C, 1, 1)  PyTorch pointwise Conv2d weight
    bn*_*     : (C,) / (Co,)   BatchNorm2d gamma/beta/running_mean/running_var
    """
    N, C, H, W = x.shape
    Co = pw_weight.shape[0]
    HW = H * W

    # ---- Fold BatchNorm (eval) into conv weights + one bias per stage. ----
    s1 = bn1_gamma * jax.lax.rsqrt(bn1_var + eps)
    kdw = (dw_weight.reshape(C, 9) * s1[:, None]).astype(jnp.float32)
    bdw = (bn1_beta - bn1_mean * s1).reshape(C, 1).astype(jnp.float32)

    s2 = bn2_gamma * jax.lax.rsqrt(bn2_var + eps)
    # bf16 pointwise weights (MXU-native); accumulation stays f32 in-kernel.
    wpw = (pw_weight.reshape(Co, C) * s2[:, None]).astype(jnp.bfloat16)
    bpw = (bn2_beta - bn2_mean * s2).reshape(Co, 1).astype(jnp.float32)

    # ---- Lane masks zeroing the wrapped w-neighbour at the image edges. ----
    wcol = jnp.arange(HW, dtype=jnp.int32) % W
    wmask = jnp.stack([
        (wcol != 0).astype(jnp.float32),       # kw = 0 invalid at w == 0
        (wcol != W - 1).astype(jnp.float32),   # kw = 2 invalid at w == W-1
    ])                                         # (2, HW)

    # Lane-aligned interior offset, large enough to absorb +-(W+1) shifts.
    pad = -(-(W + 1) // 128) * 128

    # ---- VMEM budget / block sizing (per device generation). ----
    vmem_limit = max(int(_vmem_capacity_bytes() * 0.75), 32 * 1024 * 1024)
    if images_per_step is None:
        nb = _pick_images_per_step(N, C, Co, HW, pad, int(vmem_limit * 0.6))
    else:
        nb = images_per_step
    NB = N // nb

    kdw_t = jnp.tile(kdw, (nb, 1))             # (nb*C, 9)
    bdw_t = jnp.tile(bdw, (nb, 1))             # (nb*C, 1)

    # Free reshape: NCHW stays NCHW; nb images stacked along the channel rows.
    x_flat = x.reshape(NB, nb * C, HW)

    out_flat = pl.pallas_call(
        functools.partial(_dsconv_kernel, W=W, pad=pad, C=C, Co=Co),
        out_shape=jax.ShapeDtypeStruct((NB, nb * Co, HW), x.dtype),
        grid_spec=pltpu.PrefetchScalarGridSpec(
            num_scalar_prefetch=0,
            grid=(NB,),
            in_specs=[
                pl.BlockSpec((None, nb * C, HW), lambda n: (n, 0, 0)),  # images
                pl.BlockSpec((nb * C, 9), lambda n: (0, 0)),            # dw taps
                pl.BlockSpec((nb * C, 1), lambda n: (0, 0)),            # dw bias
                pl.BlockSpec((2, HW), lambda n: (0, 0)),                # w masks
                pl.BlockSpec((Co, C), lambda n: (0, 0)),                # pw W (bf16)
                pl.BlockSpec((Co, 1), lambda n: (0, 0)),                # pw bias
            ],
            out_specs=pl.BlockSpec((None, nb * Co, HW), lambda n: (n, 0, 0)),
            scratch_shapes=[pltpu.VMEM((nb * C, HW + 2 * pad), jnp.float32)],
        ),
        compiler_params=pltpu.CompilerParams(
            dimension_semantics=("parallel",),
            vmem_limit_bytes=vmem_limit,
        ),
    )(x_flat, kdw_t, bdw_t, wmask, wpw, bpw)

    return out_flat.reshape(N, Co, H, W)


def _reference(x, dw_w, g1, b1, m1, v1, pw_w, g2, b2, m2, v2, eps=1e-5):
    """Pure-JAX reference of the same eval-mode DSConv forward (NCHW, f32)."""
    C = x.shape[1]
    y = jax.lax.conv_general_dilated(
        x, dw_w, window_strides=(1, 1), padding=((1, 1), (1, 1)),
        dimension_numbers=("NCHW", "OIHW", "NCHW"), feature_group_count=C)
    s1 = g1 / jnp.sqrt(v1 + eps)
    y = y * s1[None, :, None, None] + (b1 - m1 * s1)[None, :, None, None]
    y = jnp.clip(y, 0.0, 6.0)
    z = jax.lax.conv_general_dilated(
        y, pw_w, window_strides=(1, 1), padding="VALID",
        dimension_numbers=("NCHW", "OIHW", "NCHW"))
    s2 = g2 / jnp.sqrt(v2 + eps)
    z = z * s2[None, :, None, None] + (b2 - m2 * s2)[None, :, None, None]
    return z


if __name__ == "__main__":
    key = jax.random.PRNGKey(0)
    ks = jax.random.split(key, 11)

    N, C, Co, H, W = 2, 8, 16, 16, 16   # small shapes; H*W = 256 (lane-dense)

    x = jax.random.normal(ks[0], (N, C, H, W), jnp.float32)
    dw_w = 0.2 * jax.random.normal(ks[1], (C, 1, 3, 3), jnp.float32)
    pw_w = 0.2 * jax.random.normal(ks[2], (Co, C, 1, 1), jnp.float32)

    g1 = 1.0 + 0.1 * jax.random.normal(ks[3], (C,), jnp.float32)
    b1 = 0.1 * jax.random.normal(ks[4], (C,), jnp.float32)
    m1 = 0.1 * jax.random.normal(ks[5], (C,), jnp.float32)
    v1 = jax.nn.softplus(jax.random.normal(ks[6], (C,), jnp.float32)) + 0.5

    g2 = 1.0 + 0.1 * jax.random.normal(ks[7], (Co,), jnp.float32)
    b2 = 0.1 * jax.random.normal(ks[8], (Co,), jnp.float32)
    m2 = 0.1 * jax.random.normal(ks[9], (Co,), jnp.float32)
    v2 = jax.nn.softplus(jax.random.normal(ks[10], (Co,), jnp.float32)) + 0.5

    out = dsconv_forward(x, dw_w, g1, b1, m1, v1, pw_w, g2, b2, m2, v2)
    out = jax.block_until_ready(out)

    ref = _reference(x, dw_w, g1, b1, m1, v1, pw_w, g2, b2, m2, v2)
    assert out.shape == (N, Co, H, W)
    # Pointwise matmul runs with bf16 operands (f32 accumulation), so the
    # tolerance is looser than a pure-f32 path.
    max_err = float(jnp.max(jnp.abs(out - ref)))
    assert jnp.allclose(out, ref, atol=2e-2, rtol=2e-2), max_err

    print("KERNEL_OK")
</pallas_src>

<mosaic_0001>
module attributes {stable_mosaic.version = 11 : i64} {
  func.func @_dsconv_kernel(%arg0: i32, %arg1: memref<1x8x256xf32, #tpu.memory_space<vmem>>, %arg2: memref<8x9xf32, #tpu.memory_space<vmem>>, %arg3: memref<8x1xf32, #tpu.memory_space<vmem>>, %arg4: memref<2x256xf32, #tpu.memory_space<vmem>>, %arg5: memref<16x8xbf16, #tpu.memory_space<vmem>>, %arg6: memref<16x1xf32, #tpu.memory_space<vmem>>, %arg7: memref<1x16x256xf32, #tpu.memory_space<vmem>>, %arg8: memref<8x512xf32, #tpu.memory_space<vmem>>) attributes {dimension_semantics = [#tpu.dimension_semantics<parallel>], iteration_bounds = array<i64: 2>, scalar_prefetch = 0 : i64, scratch_operands = 1 : i64, tpu.core_type = #tpu.core_type<tc>, window_params = [{transform_indices = @transform_0, window_bounds = array<i64: 1, 8, 256>}, {pipeline_mode = #tpu.pipeline_mode<synchronous>, transform_indices = @transform_1, window_bounds = array<i64: 8, 9>}, {pipeline_mode = #tpu.pipeline_mode<synchronous>, transform_indices = @transform_2, window_bounds = array<i64: 8, 1>}, {pipeline_mode = #tpu.pipeline_mode<synchronous>, transform_indices = @transform_3, window_bounds = array<i64: 2, 256>}, {pipeline_mode = #tpu.pipeline_mode<synchronous>, transform_indices = @transform_4, window_bounds = array<i64: 16, 8>}, {pipeline_mode = #tpu.pipeline_mode<synchronous>, transform_indices = @transform_5, window_bounds = array<i64: 16, 1>}, {transform_indices = @transform_6, window_bounds = array<i64: 1, 16, 256>}]} {
    %cst = arith.constant 0.000000e+00 : f32
    %0 = vector.broadcast %cst : f32 to vector<8x128xf32>
    %c0 = arith.constant 0 : index
    %c0_0 = arith.constant 0 : index
    %1 = vector.load %arg8[%c0, %c0_0] : memref<8x512xf32, #tpu.memory_space<vmem>>, vector<8x128xf32>
    tpu.vector_store %arg8[%c0, %c0_0], %0 {strides = array<i32>} : memref<8x512xf32, #tpu.memory_space<vmem>>, vector<8x128xf32>,
    %cst_1 = arith.constant 0.000000e+00 : f32
    %2 = vector.broadcast %cst_1 : f32 to vector<8x128xf32>
    %c0_2 = arith.constant 0 : index
    %c384 = arith.constant 384 : index
    %3 = vector.load %arg8[%c0_2, %c384] : memref<8x512xf32, #tpu.memory_space<vmem>>, vector<8x128xf32>
    tpu.vector_store %arg8[%c0_2, %c384], %2 {strides = array<i32>} : memref<8x512xf32, #tpu.memory_space<vmem>>, vector<8x128xf32>,
    %c0_3 = arith.constant 0 : index
    %c0_4 = arith.constant 0 : index
    %c0_5 = arith.constant 0 : index
    %4 = vector.load %arg1[%c0_3, %c0_4, %c0_5] : memref<1x8x256xf32, #tpu.memory_space<vmem>>, vector<1x8x256xf32>
    %5 = vector.shape_cast %4 : vector<1x8x256xf32> to vector<8x256xf32>
    %c0_6 = arith.constant 0 : index
    %c128 = arith.constant 128 : index
    %6 = vector.load %arg8[%c0_6, %c128] : memref<8x512xf32, #tpu.memory_space<vmem>>, vector<8x256xf32>
    tpu.vector_store %arg8[%c0_6, %c128], %5 {strides = array<i32>} : memref<8x512xf32, #tpu.memory_space<vmem>>, vector<8x256xf32>,
    %c0_7 = arith.constant 0 : index
    %c0_8 = arith.constant 0 : index
    %7 = vector.load %arg3[%c0_7, %c0_8] : memref<8x1xf32, #tpu.memory_space<vmem>>, vector<8x1xf32>
    %c0_9 = arith.constant 0 : index
    %c111 = arith.constant 111 : index
    %8 = vector.load %arg8[%c0_9, %c111] : memref<8x512xf32, #tpu.memory_space<vmem>>, vector<8x256xf32>
    %c0_10 = arith.constant 0 : index
    %c0_11 = arith.constant 0 : index
    %9 = vector.load %arg2[%c0_10, %c0_11] : memref<8x9xf32, #tpu.memory_space<vmem>>, vector<8x1xf32>
    %10 = vector.broadcast %9 : vector<8x1xf32> to vector<8x256xf32>
    %11 = arith.mulf %8, %10 : vector<8x256xf32>
    %c0_12 = arith.constant 0 : index
    %c127 = arith.constant 127 : index
    %12 = vector.load %arg8[%c0_12, %c127] : memref<8x512xf32, #tpu.memory_space<vmem>>, vector<8x256xf32>
    %c0_13 = arith.constant 0 : index
    %c3 = arith.constant 3 : index
    %13 = vector.load %arg2[%c0_13, %c3] : memref<8x9xf32, #tpu.memory_space<vmem>>, vector<8x1xf32>
    %14 = vector.broadcast %13 : vector<8x1xf32> to vector<8x256xf32>
    %15 = arith.mulf %12, %14 : vector<8x256xf32>
    %16 = arith.addf %11, %15 : vector<8x256xf32>
    %c0_14 = arith.constant 0 : index
    %c143 = arith.constant 143 : index
    %17 = vector.load %arg8[%c0_14, %c143] : memref<8x512xf32, #tpu.memory_space<vmem>>, vector<8x256xf32>
    %c0_15 = arith.constant 0 : index
    %c6 = arith.constant 6 : index
    %18 = vector.load %arg2[%c0_15, %c6] : memref<8x9xf32, #tpu.memory_space<vmem>>, vector<8x1xf32>
    %19 = vector.broadcast %18 : vector<8x1xf32> to vector<8x256xf32>
    %20 = arith.mulf %17, %19 : vector<8x256xf32>
    %21 = arith.addf %16, %20 : vector<8x256xf32>
    %c0_16 = arith.constant 0 : index
    %c0_17 = arith.constant 0 : index
    %22 = vector.load %arg4[%c0_16, %c0_17] : memref<2x256xf32, #tpu.memory_space<vmem>>, vector<1x256xf32>
    %23 = vector.broadcast %22 : vector<1x256xf32> to vector<8x256xf32>
    %24 = arith.mulf %21, %23 : vector<8x256xf32>
    %25 = vector.broadcast %7 : vector<8x1xf32> to vector<8x256xf32>
    %26 = arith.addf %25, %24 : vector<8x256xf32>
    %c0_18 = arith.constant 0 : index
    %c112 = arith.constant 112 : index
    %27 = vector.load %arg8[%c0_18, %c112] : memref<8x512xf32, #tpu.memory_space<vmem>>, vector<8x256xf32>
    %c0_19 = arith.constant 0 : index
    %c1 = arith.constant 1 : index
    %28 = vector.load %arg2[%c0_19, %c1] : memref<8x9xf32, #tpu.memory_space<vmem>>, vector<8x1xf32>
    %29 = vector.broadcast %28 : vector<8x1xf32> to vector<8x256xf32>
    %30 = arith.mulf %27, %29 : vector<8x256xf32>
    %c0_20 = arith.constant 0 : index
    %c128_21 = arith.constant 128 : index
    %31 = vector.load %arg8[%c0_20, %c128_21] : memref<8x512xf32, #tpu.memory_space<vmem>>, vector<8x256xf32>
    %c0_22 = arith.constant 0 : index
    %c4 = arith.constant 4 : index
    %32 = vector.load %arg2[%c0_22, %c4] : memref<8x9xf32, #tpu.memory_space<vmem>>, vector<8x1xf32>
    %33 = vector.broadcast %32 : vector<8x1xf32> to vector<8x256xf32>
    %34 = arith.mulf %31, %33 : vector<8x256xf32>
    %35 = arith.addf %30, %34 : vector<8x256xf32>
    %c0_23 = arith.constant 0 : index
    %c144 = arith.constant 144 : index
    %36 = vector.load %arg8[%c0_23, %c144] : memref<8x512xf32, #tpu.memory_space<vmem>>, vector<8x256xf32>
    %c0_24 = arith.constant 0 : index
    %c7 = arith.constant 7 : index
    %37 = vector.load %arg2[%c0_24, %c7] : memref<8x9xf32, #tpu.memory_space<vmem>>, vector<8x1xf32>
    %38 = vector.broadcast %37 : vector<8x1xf32> to vector<8x256xf32>
    %39 = arith.mulf %36, %38 : vector<8x256xf32>
    %40 = arith.addf %35, %39 : vector<8x256xf32>
    %41 = arith.addf %26, %40 : vector<8x256xf32>
    %c0_25 = arith.constant 0 : index
    %c113 = arith.constant 113 : index
    %42 = vector.load %arg8[%c0_25, %c113] : memref<8x512xf32, #tpu.memory_space<vmem>>, vector<8x256xf32>
    %c0_26 = arith.constant 0 : index
    %c2 = arith.constant 2 : index
    %43 = vector.load %arg2[%c0_26, %c2] : memref<8x9xf32, #tpu.memory_space<vmem>>, vector<8x1xf32>
    %44 = vector.broadcast %43 : vector<8x1xf32> to vector<8x256xf32>
    %45 = arith.mulf %42, %44 : vector<8x256xf32>
    %c0_27 = arith.constant 0 : index
    %c129 = arith.constant 129 : index
    %46 = vector.load %arg8[%c0_27, %c129] : memref<8x512xf32, #tpu.memory_space<vmem>>, vector<8x256xf32>
    %c0_28 = arith.constant 0 : index
    %c5 = arith.constant 5 : index
    %47 = vector.load %arg2[%c0_28, %c5] : memref<8x9xf32, #tpu.memory_space<vmem>>, vector<8x1xf32>
    %48 = vector.broadcast %47 : vector<8x1xf32> to vector<8x256xf32>
    %49 = arith.mulf %46, %48 : vector<8x256xf32>
    %50 = arith.addf %45, %49 : vector<8x256xf32>
    %c0_29 = arith.constant 0 : index
    %c145 = arith.constant 145 : index
    %51 = vector.load %arg8[%c0_29, %c145] : memref<8x512xf32, #tpu.memory_space<vmem>>, vector<8x256xf32>
    %c0_30 = arith.constant 0 : index
    %c8 = arith.constant 8 : index
    %52 = vector.load %arg2[%c0_30, %c8] : memref<8x9xf32, #tpu.memory_space<vmem>>, vector<8x1xf32>
    %53 = vector.broadcast %52 : vector<8x1xf32> to vector<8x256xf32>
    %54 = arith.mulf %51, %53 : vector<8x256xf32>
    %55 = arith.addf %50, %54 : vector<8x256xf32>
    %c1_31 = arith.constant 1 : index
    %c0_32 = arith.constant 0 : index
    %56 = vector.load %arg4[%c1_31, %c0_32] : memref<2x256xf32, #tpu.memory_space<vmem>>, vector<1x256xf32>
    %57 = vector.broadcast %56 : vector<1x256xf32> to vector<8x256xf32>
    %58 = arith.mulf %55, %57 : vector<8x256xf32>
    %59 = arith.addf %41, %58 : vector<8x256xf32>
    %cst_33 = arith.constant 0.000000e+00 : f32
    %cst_34 = arith.constant 6.000000e+00 : f32
    %60 = vector.broadcast %cst_33 : f32 to vector<8x256xf32>
    %61 = arith.maximumf %60, %59 : vector<8x256xf32>
    %62 = vector.broadcast %cst_34 : f32 to vector<8x256xf32>
    %63 = arith.minimumf %62, %61 : vector<8x256xf32>
    %64 = arith.truncf %63 : vector<8x256xf32> to vector<8x256xbf16>
    %c0_35 = arith.constant 0 : index
    %c0_36 = arith.constant 0 : index
    %65 = vector.load %arg5[%c0_35, %c0_36] : memref<16x8xbf16, #tpu.memory_space<vmem>>, vector<16x8xbf16>
    %cst_37 = arith.constant dense<0.000000e+00> : vector<16x256xf32>
    %66 = tpu.matmul %65, %64, %cst_37 {dimension_numbers = #tpu.dot_dimension_numbers<[1], [0], [0], [1], [0, 0, 1, 1], [], []>} : vector<16x8xbf16>, vector<8x256xbf16>, vector<16x256xf32> -> vector<16x256xf32>
    %c0_38 = arith.constant 0 : index
    %c0_39 = arith.constant 0 : index
    %67 = vector.load %arg6[%c0_38, %c0_39] : memref<16x1xf32, #tpu.memory_space<vmem>>, vector<16x1xf32>
    %68 = vector.broadcast %67 : vector<16x1xf32> to vector<16x256xf32>
    %69 = arith.addf %66, %68 : vector<16x256xf32>
    %c0_40 = arith.constant 0 : index
    %c0_41 = arith.constant 0 : index
    %c0_42 = arith.constant 0 : index
    %70 = vector.load %arg7[%c0_40, %c0_41, %c0_42] : memref<1x16x256xf32, #tpu.memory_space<vmem>>, vector<1x16x256xf32>
    %71 = vector.shape_cast %70 : vector<1x16x256xf32> to vector<16x256xf32>
    %72 = vector.shape_cast %69 : vector<16x256xf32> to vector<1x16x256xf32>
    tpu.vector_store %arg7[%c0_40, %c0_41, %c0_42], %72 {strides = array<i32>} : memref<1x16x256xf32, #tpu.memory_space<vmem>>, vector<1x16x256xf32>,
    return
  }
  func.func @transform_0(%arg0: i32) -> (i32, i32, i32) {
    %c0_i32 = arith.constant 0 : i32
    %c0_i32_0 = arith.constant 0 : i32
    %c0_i32_1 = arith.constant 0 : i32
    return %arg0, %c0_i32, %c0_i32_0 : i32, i32, i32
  }
  func.func @transform_1(%arg0: i32) -> (i32, i32) {
    %c0_i32 = arith.constant 0 : i32
    %c0_i32_0 = arith.constant 0 : i32
    %c0_i32_1 = arith.constant 0 : i32
    return %c0_i32, %c0_i32_0 : i32, i32
  }
  func.func @transform_2(%arg0: i32) -> (i32, i32) {
    %c0_i32 = arith.constant 0 : i32
    %c0_i32_0 = arith.constant 0 : i32
    %c0_i32_1 = arith.constant 0 : i32
    return %c0_i32, %c0_i32_0 : i32, i32
  }
  func.func @transform_3(%arg0: i32) -> (i32, i32) {
    %c0_i32 = arith.constant 0 : i32
    %c0_i32_0 = arith.constant 0 : i32
    %c0_i32_1 = arith.constant 0 : i32
    return %c0_i32, %c0_i32_0 : i32, i32
  }
  func.func @transform_4(%arg0: i32) -> (i32, i32) {
    %c0_i32 = arith.constant 0 : i32
    %c0_i32_0 = arith.constant 0 : i32
    %c0_i32_1 = arith.constant 0 : i32
    return %c0_i32, %c0_i32_0 : i32, i32
  }
  func.func @transform_5(%arg0: i32) -> (i32, i32) {
    %c0_i32 = arith.constant 0 : i32
    %c0_i32_0 = arith.constant 0 : i32
    %c0_i32_1 = arith.constant 0 : i32
    return %c0_i32, %c0_i32_0 : i32, i32
  }
  func.func @transform_6(%arg0: i32) -> (i32, i32, i32) {
    %c0_i32 = arith.constant 0 : i32
    %c0_i32_0 = arith.constant 0 : i32
    %c0_i32_1 = arith.constant 0 : i32
    return %arg0, %c0_i32, %c0_i32_0 : i32, i32, i32
  }
}

</mosaic_0001>

<llo_original>
// kernel: tpu_custom_call.1
$region0: #{tpu_custom_call.1}
  #allocation0 [shape = 'u32[]', space=smem, size = 0x4, offset = 0x4, fixed_abs, tag = 'smem constant byte address 0x4 - core index']
  #allocation1 [shape = 'u32[72,128]{1,0:T(1,128)}', space=vmem, size = 0x9000, scoped, tag = 'internal scratch']
  #allocation2 [shape = 'f32[8,512]{1,0:T(8,128)}', space=vmem, size = 0x4000, scoped, tag = 'scratch operand']
  %s0 = inlined_call_operand.hbm [shape: f32[2,8,256], index: 0, kind: input, shape index: {}]
  %s1 = inlined_call_operand.vmem [shape: f32[8,9], index: 1, kind: input, shape index: {}]
  %s2 = inlined_call_operand.vmem [shape: f32[8,1], index: 2, kind: input, shape index: {}]
  %s3 = inlined_call_operand.vmem [shape: f32[2,256], index: 3, kind: input, shape index: {}]
  %s4 = inlined_call_operand.vmem [shape: bf16[16,8], index: 4, kind: input, shape index: {}]
  %s5 = inlined_call_operand.vmem [shape: f32[16,1], index: 5, kind: input, shape index: {}]
  %s6 = inlined_call_operand.hbm [shape: f32[2,16,256], index: 6, kind: output, shape index: {}]
  %s7 = sld [smem:[#allocation0]]
  $region61: #{tpu_custom_call.1} parent=0
    _
  %s9 = ssub.s32 1, %s7
  %s10 = scalar_select 0, %s9, %s7
  $region1: #{tpu_custom_call.1} parent=0
    #allocation3 [shape = 'u8[16384]{0}', space=vmem, size = 0x4000, scoped, tag = 'input window, operand 0']
    #allocation4 [shape = 's32[2]{0}', space=sflag, size = 0x8, scoped, tag = 'scoped memory for tpu_custom_call.1']
    #allocation5 [shape = 's32[2]{0}', space=sflag, size = 0x8, scoped, tag = 'scoped memory for tpu_custom_call.1']
    #allocation6 [shape = 'u8[32768]{0}', space=vmem, size = 0x8000, scoped, tag = 'output window, operand 0']
    %11 = vsyncpa [#allocation4], 0
    %s12 = scalar_lea.sflag [#allocation4], 1
    %13 = vsyncpa %s12, 0
    %14 = vsyncpa [#allocation5], 0
    %s15 = scalar_lea.sflag [#allocation5], 1
    %16 = vsyncpa %s15, 0
    loop: start=0, step=1, limit=4
    $region2: #{tpu_custom_call.1} parent=1 // loop_pre_header
      _
    $region3: #{tpu_custom_call.1} parent=1 // loop_header
      %s18 = sphi 0, %s22
      %p19 = scmp.ge.s32.totalorder %s18, 4
      %s28 = sphi 0, %s30
      %s31 = sphi 0, %s28
      %s32 = sphi 0, %s31
      %s48 = sphi 0, %s32
      %s52 = sphi 0, %s52
      %s54 = sphi 0, %s52
      %s55 = sphi 0, %s54
      %s69 = sphi 0, %s55
      %s73 = sphi 0, %s73
      %s75 = sphi 0, %s73
      %s76 = sphi 0, %s75
      %s90 = sphi 0, %s76
      %s94 = sphi 0, %s94
      %s96 = sphi 0, %s94
      %s97 = sphi 0, %s96
      %s111 = sphi 0, %s97
      %s115 = sphi 0, %s115
      %s117 = sphi 0, %s115
      %s118 = sphi 0, %s117
      %s132 = sphi 0, %s118
      %s136 = sphi 0, %s136
      %s138 = sphi 0, %s136
      %s139 = sphi 0, %s138
      %s153 = sphi 0, %s139
      %s159 = sphi 0, %s161
      %s162 = sphi 0, %s159
      %s163 = sphi 0, %s162
      %s179 = sphi 0, %s163
    $region4: #{tpu_custom_call.1} parent=1 // loop_header_branch
      %21 = sbr.rel (%p19) target = $region8
    $region5: #{tpu_custom_call.1} parent=1 // loop_body
      %s23 = ssub.s32 %s18, 1
      %s24 = ssub.s32 %s18, 2
      %s25 = sadd.s32 %s18, 1
      %s26 = ssub.s32 %s18, %s25
      %p27 = scmp.eq.s32.totalorder %s26, 0
      %s29 = sadd.s32 %s28, 1
      %s30 = scalar_select %p27, %s28, %s29
      %p33 = pneg %p27
      %p34 = scmp.eq.s32.totalorder %s18, 1
      %p35 = por %p33, %p34
      %p36 = scmp.ne.s32.totalorder %s28, %s31
      %p37 = scmp.eq.s32.totalorder %s18, 0
      %p38 = por %p36, %p37
      %p39 = scmp.ne.s32.totalorder %s28, %s31
      %p40 = scmp.eq.s32.totalorder %s23, 1
      %p41 = por %p39, %p40
      %p42 = scmp.ne.s32.totalorder %s31, %s32
      %p43 = scmp.eq.s32.totalorder %s23, 0
      %p44 = por %p42, %p43
      %p45 = scmp.ne.s32.totalorder %s31, %s32
      %p46 = scmp.eq.s32.totalorder %s24, 1
      %p47 = por %p45, %p46
      %p49 = scmp.ne.s32.totalorder %s32, %s48
      %p50 = scmp.eq.s32.totalorder %s24, 0
      %p51 = por %p49, %p50
      %s53 = sadd.s32 %s52, 1
      %p56 = scmp.eq.s32.totalorder %s18, 1
      %p57 = scmp.ne.s32.totalorder %s52, %s54
      %p58 = scmp.eq.s32.totalorder %s18, 0
      %p59 = por %p57, %p58
      %p60 = scmp.ne.s32.totalorder %s52, %s54
      %p61 = scmp.eq.s32.totalorder %s23, 1
      %p62 = por %p60, %p61
      %p63 = scmp.ne.s32.totalorder %s54, %s55
      %p64 = scmp.eq.s32.totalorder %s23, 0
      %p65 = por %p63, %p64
      %p66 = scmp.ne.s32.totalorder %s54, %s55
      %p67 = scmp.eq.s32.totalorder %s24, 1
      %p68 = por %p66, %p67
      %p70 = scmp.ne.s32.totalorder %s55, %s69
      %p71 = scmp.eq.s32.totalorder %s24, 0
      %p72 = por %p70, %p71
      %s74 = sadd.s32 %s73, 1
      %p77 = scmp.eq.s32.totalorder %s18, 1
      %p78 = scmp.ne.s32.totalorder %s73, %s75
      %p79 = scmp.eq.s32.totalorder %s18, 0
      %p80 = por %p78, %p79
      %p81 = scmp.ne.s32.totalorder %s73, %s75
      %p82 = scmp.eq.s32.totalorder %s23, 1
      %p83 = por %p81, %p82
      %p84 = scmp.ne.s32.totalorder %s75, %s76
      %p85 = scmp.eq.s32.totalorder %s23, 0
      %p86 = por %p84, %p85
      %p87 = scmp.ne.s32.totalorder %s75, %s76
      %p88 = scmp.eq.s32.totalorder %s24, 1
      %p89 = por %p87, %p88
      %p91 = scmp.ne.s32.totalorder %s76, %s90
      %p92 = scmp.eq.s32.totalorder %s24, 0
      %p93 = por %p91, %p92
      %s95 = sadd.s32 %s94, 1
      %p98 = scmp.eq.s32.totalorder %s18, 1
      %p99 = scmp.ne.s32.totalorder %s94, %s96
      %p100 = scmp.eq.s32.totalorder %s18, 0
      %p101 = por %p99, %p100
      %p102 = scmp.ne.s32.totalorder %s94, %s96
      %p103 = scmp.eq.s32.totalorder %s23, 1
      %p104 = por %p102, %p103
      %p105 = scmp.ne.s32.totalorder %s96, %s97
      %p106 = scmp.eq.s32.totalorder %s23, 0
      %p107 = por %p105, %p106
      %p108 = scmp.ne.s32.totalorder %s96, %s97
      %p109 = scmp.eq.s32.totalorder %s24, 1
      %p110 = por %p108, %p109
      %p112 = scmp.ne.s32.totalorder %s97, %s111
      %p113 = scmp.eq.s32.totalorder %s24, 0
      %p114 = por %p112, %p113
      %s116 = sadd.s32 %s115, 1
      %p119 = scmp.eq.s32.totalorder %s18, 1
      %p120 = scmp.ne.s32.totalorder %s115, %s117
      %p121 = scmp.eq.s32.totalorder %s18, 0
      %p122 = por %p120, %p121
      %p123 = scmp.ne.s32.totalorder %s115, %s117
      %p124 = scmp.eq.s32.totalorder %s23, 1
      %p125 = por %p123, %p124
      %p126 = scmp.ne.s32.totalorder %s117, %s118
      %p127 = scmp.eq.s32.totalorder %s23, 0
      %p128 = por %p126, %p127
      %p129 = scmp.ne.s32.totalorder %s117, %s118
      %p130 = scmp.eq.s32.totalorder %s24, 1
      %p131 = por %p129, %p130
      %p133 = scmp.ne.s32.totalorder %s118, %s132
      %p134 = scmp.eq.s32.totalorder %s24, 0
      %p135 = por %p133, %p134
      %s137 = sadd.s32 %s136, 1
      %p140 = scmp.eq.s32.totalorder %s18, 1
      %p141 = scmp.ne.s32.totalorder %s136, %s138
      %p142 = scmp.eq.s32.totalorder %s18, 0
      %p143 = por %p141, %p142
      %p144 = scmp.ne.s32.totalorder %s136, %s138
      %p145 = scmp.eq.s32.totalorder %s23, 1
      %p146 = por %p144, %p145
      %p147 = scmp.ne.s32.totalorder %s138, %s139
      %p148 = scmp.eq.s32.totalorder %s23, 0
      %p149 = por %p147, %p148
      %p150 = scmp.ne.s32.totalorder %s138, %s139
      %p151 = scmp.eq.s32.totalorder %s24, 1
      %p152 = por %p150, %p151
      %p154 = scmp.ne.s32.totalorder %s139, %s153
      %p155 = scmp.eq.s32.totalorder %s24, 0
      %p156 = por %p154, %p155
      %s157 = ssub.s32 %s18, %s25
      %p158 = scmp.eq.s32.totalorder %s157, 0
      %s160 = sadd.s32 %s159, 1
      %s161 = scalar_select %p158, %s159, %s160
      %p164 = pneg %p158
      %p165 = scmp.eq.s32.totalorder %s18, 1
      %p166 = por %p164, %p165
      %p167 = scmp.ne.s32.totalorder %s159, %s162
      %p168 = scmp.eq.s32.totalorder %s18, 0
      %p169 = por %p167, %p168
      %p170 = scmp.ne.s32.totalorder %s159, %s162
      %p171 = scmp.eq.s32.totalorder %s23, 1
      %p172 = por %p170, %p171
      %p173 = scmp.ne.s32.totalorder %s162, %s163
      %p174 = scmp.eq.s32.totalorder %s23, 0
      %p175 = por %p173, %p174
      %p176 = scmp.ne.s32.totalorder %s162, %s163
      %p177 = scmp.eq.s32.totalorder %s24, 1
      %p178 = por %p176, %p177
      %p180 = scmp.ne.s32.totalorder %s163, %s179
      %p181 = scmp.eq.s32.totalorder %s24, 0
      %p182 = por %p180, %p181
      %p183 = scmp.le.s32.totalorder 1, %s18
      %p184 = scmp.lt.s32.totalorder %s18, 3
      %p185 = pnand %p183, %p184
      %p186 = pneg %p185
      // Predicated region
      $region9: #{tpu_custom_call.1} parent=5 // pred_check
        _
      $region10: #{tpu_custom_call.1} parent=5 // pred_check_branch
        %188 = sbr.rel (%p185) target = $region12
      $region11: #{tpu_custom_call.1} parent=5 // pred_region
        %s189 = ssub.s32 %s18, 1
        // Predicated region
        $region13: #{tpu_custom_call.1} parent=11 // pred_check
          %p190 = pneg %p65
        $region14: #{tpu_custom_call.1} parent=11 // pred_check_branch
          %192 = sbr.rel (%p190) target = $region16
        $region15: #{tpu_custom_call.1} parent=11 // pred_region
          _
        $region16: #{tpu_custom_call.1} parent=11 // pred_fallthru
          _
        // Predicated region
        $region17: #{tpu_custom_call.1} parent=11 // pred_check
          %p193 = pneg %p86
        $region18: #{tpu_custom_call.1} parent=11 // pred_check_branch
          %195 = sbr.rel (%p193) target = $region20
        $region19: #{tpu_custom_call.1} parent=11 // pred_region
          _
        $region20: #{tpu_custom_call.1} parent=11 // pred_fallthru
          _
        // Predicated region
        $region21: #{tpu_custom_call.1} parent=11 // pred_check
          %p196 = pneg %p107
        $region22: #{tpu_custom_call.1} parent=11 // pred_check_branch
          %198 = sbr.rel (%p196) target = $region24
        $region23: #{tpu_custom_call.1} parent=11 // pred_region
          _
        $region24: #{tpu_custom_call.1} parent=11 // pred_fallthru
          _
        // Predicated region
        $region25: #{tpu_custom_call.1} parent=11 // pred_check
          %p199 = pneg %p128
        $region26: #{tpu_custom_call.1} parent=11 // pred_check_branch
          %201 = sbr.rel (%p199) target = $region28
        $region27: #{tpu_custom_call.1} parent=11 // pred_region
          _
        $region28: #{tpu_custom_call.1} parent=11 // pred_fallthru
          _
        // Predicated region
        $region29: #{tpu_custom_call.1} parent=11 // pred_check
          %p202 = pneg %p149
        $region30: #{tpu_custom_call.1} parent=11 // pred_check_branch
          %204 = sbr.rel (%p202) target = $region32
        $region31: #{tpu_custom_call.1} parent=11 // pred_region
          _
        $region32: #{tpu_custom_call.1} parent=11 // pred_fallthru
          _
      $region12: #{tpu_custom_call.1} parent=5 // pred_fallthru
        _
      %p205 = scmp.lt.s32.totalorder %s18, 2
      // Predicated region
      $region33: #{tpu_custom_call.1} parent=5 // pred_check
        %p206 = pneg %p205
      $region34: #{tpu_custom_call.1} parent=5 // pred_check_branch
        %208 = sbr.rel (%p206) target = $region36
      $region35: #{tpu_custom_call.1} parent=5 // pred_region
        // Predicated region
        $region37: #{tpu_custom_call.1} parent=35 // pred_check
          %p209 = pneg %p38
        $region38: #{tpu_custom_call.1} parent=35 // pred_check_branch
          %211 = sbr.rel (%p209) target = $region40
        $region39: #{tpu_custom_call.1} parent=35 // pred_region
          %s212 = sand.u32 %s28, 1
          %s213 = scalar_lea.sflag [#allocation4], %s212
          %s214 = sand.u32 %s28, 1
          %s215 = smul.addr %s214, 16
          %s216 = scalar_lea.vmem [#allocation3], %s215
          %218 = vsyncadd %s213, 0
          %s219 = smul.addr %s18, 2
          %s220 = smul.addr %s219, 8
          %s221 = scalar_lea.hbm %s0, %s220
          %s223 = sshll.u32 %s221, 4
          %s224 = int_to_ptr.hbm [resolvable:$true] %s223
          %s225 = sshll.u32 %s216, 4
          %s226 = int_to_ptr.vmem [resolvable:$true] %s225
          %228 = dma.hbm_to_vmem [thread:$0]  %s224, 256, %s226, %s213
        $region40: #{tpu_custom_call.1} parent=35 // pred_fallthru
          _
      $region36: #{tpu_custom_call.1} parent=5 // pred_fallthru
        _
      %p229 = scmp.le.s32.totalorder 1, %s18
      %p230 = scmp.lt.s32.totalorder %s18, 3
      %p231 = pnand %p229, %p230
      %p232 = pneg %p231
      // Predicated region
      $region41: #{tpu_custom_call.1} parent=5 // pred_check
        _
      $region42: #{tpu_custom_call.1} parent=5 // pred_check_branch
        %234 = sbr.rel (%p231) target = $region44
      $region43: #{tpu_custom_call.1} parent=5 // pred_region
        %s235 = ssub.s32 %s18, 1
        %s236 = sand.u32 %s31, 1
        %s237 = scalar_lea.sflag [#allocation4], %s236
        %s238 = sand.u32 %s31, 1
        %s239 = smul.addr %s238, 16
        %s240 = scalar_lea.vmem [#allocation3], %s239
        // Predicated region
        $region45: #{tpu_custom_call.1} parent=43 // pred_check
          %p241 = pneg %p44
        $region46: #{tpu_custom_call.1} parent=43 // pred_check_branch
          %243 = sbr.rel (%p241) target = $region48
        $region47: #{tpu_custom_call.1} parent=43 // pred_region
          %245 = dma.done %s237, 256
        $region48: #{tpu_custom_call.1} parent=43 // pred_fallthru
          _
        %s246 = sand.u32 %s31, 1
        %s247 = scalar_lea.sflag [#allocation4], %s246
        %s248 = sand.u32 %s31, 1
        %s249 = smul.addr %s248, 16
        %s250 = scalar_lea.vmem [#allocation3], %s249
        %p251 = pneg %p44
        %p252 = pneg %p41
        %p253 = pneg %p65
        %p254 = pneg %p62
        %p255 = pneg %p86
        %p256 = pneg %p83
        %p257 = pneg %p107
        %p258 = pneg %p104
        %p259 = pneg %p128
        %p260 = pneg %p125
        %p261 = pneg %p149
        %p262 = pneg %p146
        %p263 = pneg %p175
        %p264 = pneg %p172
        %s265 = sand.u32 %s162, 1
        %s266 = scalar_lea.sflag [#allocation5], %s265
        %s267 = sand.u32 %s162, 1
        %s268 = smul.addr %s267, 32
        %s269 = scalar_lea.vmem [#allocation6], %s268
        %271 = vst [vmem:[#allocation2] sm:$0xff] 0.0
        %272 = vst [vmem:[#allocation2 + $0x18] sm:$0xff] 0.0
        %v273 = vld [vmem:[%s240] sm:$0xff]
        %v274 = vld [vmem:[%s240 + $0x8] sm:$0xff]
        %275 = vst [vmem:[#allocation2 + $0x8] sm:$0xff] %v273
        %276 = vst [vmem:[#allocation2 + $0x10] sm:$0xff] %v274
        %v277 = vld [vmem:[%s2] sm:$0xff]
        %v278 = vld [vmem:[#allocation2] sm:$0xff]
        %v279 = vld [vmem:[#allocation2 + $0x8] sm:$0xff]
        %v280 = vld [vmem:[#allocation2 + $0x10] sm:$0xff]
        %v281 = vld [vmem:[%s1] sm:$0xff]
        %283 = vset.pattern.permute.xlu0 0
        %284 = vperm.xlu0 %283, %v281
        %v285 = vpop.permute.xlu0 %284
        %v287 = vmul.f32 %v278, %v285
        %v288 = vmul.f32 %v279, %v285
        %v289 = vmul.f32 %v280, %v285
        %290 = vset.pattern.permute.xlu0 3
        %291 = vperm.xlu0 %290, %v281
        %v292 = vpop.permute.xlu0 %291
        %v294 = vmul.f32 %v278, %v292
        %v295 = vmul.f32 %v279, %v292
        %v296 = vmul.f32 %v280, %v292
        %300 = vrot.lane.b32.xlu0 %v294, 112
        %v301 = vpop.permute.xlu0 %300
        %302 = vrot.lane.b32.xlu0 %v295, 112
        %v303 = vpop.permute.xlu0 %302
        %304 = vrot.lane.b32.xlu0 %v296, 112
        %v305 = vpop.permute.xlu0 %304
        %vm306 = vcmask 916480
        %v307 = vsel %vm306, %v301, %v303
        %v308 = vsel %vm306, %v303, %v305
        %v312 = vadd.f32 %v287, %v307
        %v313 = vadd.f32 %v288, %v308
        %v314 = vadd.f32 %v289, %v305
        %v315 = vld [vmem:[#allocation2 + $0x8] sm:$0xff]
        %v316 = vld [vmem:[#allocation2 + $0x10] sm:$0xff]
        %v317 = vld [vmem:[#allocation2 + $0x18] sm:$0xff]
        %318 = vset.pattern.permute.xlu0 6
        %319 = vperm.xlu0 %318, %v281
        %v320 = vpop.permute.xlu0 %319
        %v322 = vmul.f32 %v315, %v320
        %v323 = vmul.f32 %v316, %v320
        %v324 = vmul.f32 %v317, %v320
        %328 = vrot.lane.b32.xlu0 %v322, 96
        %v329 = vpop.permute.xlu0 %328
        %330 = vrot.lane.b32.xlu0 %v323, 96
        %v331 = vpop.permute.xlu0 %330
        %332 = vrot.lane.b32.xlu0 %v324, 96
        %v333 = vpop.permute.xlu0 %332
        %vm334 = vcmask 785408
        %v335 = vsel %vm334, %v329, %v331
        %v336 = vsel %vm334, %v331, %v333
        %v340 = vadd.f32 %v312, %v329
        %v341 = vadd.f32 %v313, %v335
        %v342 = vadd.f32 %v314, %v336
        %v343 = vld [vmem:[%s3] ss:$2 sm:$0x3]
        %v345 = vperm.slane %v343, 0
        %v346 = vperm.slane %v343, 1
        %347 = vrot.lane.b32.xlu0 %v345, 111
        %v348 = vpop.permute.xlu0 %347
        %349 = vrot.lane.b32.xlu0 %v346, 111
        %v350 = vpop.permute.xlu0 %349
        %vm351 = vcmask 908288
        %v352 = vsel %vm351, %v348, %v350
        %v356 = vmul.f32 %v340, %v348
        %v357 = vmul.f32 %v341, %v352
        %v358 = vmul.f32 %v342, %v350
        %360 = vset.pattern.permute.xlu0 0
        %361 = vperm.xlu0 %360, %v277
        %v362 = vpop.permute.xlu0 %361
        %v364 = vadd.f32 %v362, %v356
        %v365 = vadd.f32 %v362, %v357
        %v366 = vadd.f32 %v362, %v358
        %367 = vset.pattern.permute.xlu0 1
        %368 = vperm.xlu0 %367, %v281
        %v369 = vpop.permute.xlu0 %368
        %v371 = vmul.f32 %v278, %v369
        %v372 = vmul.f32 %v279, %v369
        %v373 = vmul.f32 %v280, %v369
        %374 = vset.pattern.permute.xlu0 4
        %375 = vperm.xlu0 %374, %v281
        %v376 = vpop.permute.xlu0 %375
        %v378 = vmul.f32 %v279, %v376
        %v379 = vmul.f32 %v280, %v376
        %382 = vrot.lane.b32.xlu0 %v378, 112
        %v383 = vpop.permute.xlu0 %382
        %384 = vrot.lane.b32.xlu0 %v379, 112
        %v385 = vpop.permute.xlu0 %384
        %v386 = vsel %vm306, %v383, %v385
        %v390 = vadd.f32 %v371, %v383
        %v391 = vadd.f32 %v372, %v386
        %v392 = vadd.f32 %v373, %v385
        %393 = vset.pattern.permute.xlu0 7
        %394 = vperm.xlu0 %393, %v281
        %v395 = vpop.permute.xlu0 %394
        %v397 = vmul.f32 %v315, %v395
        %v398 = vmul.f32 %v316, %v395
        %v399 = vmul.f32 %v317, %v395
        %403 = vrot.lane.b32.xlu0 %v397, 96
        %v404 = vpop.permute.xlu0 %403
        %405 = vrot.lane.b32.xlu0 %v398, 96
        %v406 = vpop.permute.xlu0 %405
        %407 = vrot.lane.b32.xlu0 %v399, 96
        %v408 = vpop.permute.xlu0 %407
        %v409 = vsel %vm334, %v404, %v406
        %v410 = vsel %vm334, %v406, %v408
        %v414 = vadd.f32 %v390, %v404
        %v415 = vadd.f32 %v391, %v409
        %v416 = vadd.f32 %v392, %v410
        %420 = vrot.lane.b32.xlu0 %v414, 127
        %v421 = vpop.permute.xlu0 %420
        %422 = vrot.lane.b32.xlu0 %v415, 127
        %v423 = vpop.permute.xlu0 %422
        %424 = vrot.lane.b32.xlu0 %v416, 127
        %v425 = vpop.permute.xlu0 %424
        %vm426 = vcmask 1039360
        %v427 = vsel %vm426, %v421, %v423
        %v428 = vsel %vm426, %v423, %v425
        %v432 = vadd.f32 %v364, %v427
        %v433 = vadd.f32 %v365, %v428
        %v434 = vadd.f32 %v366, %v425
        %435 = vset.pattern.permute.xlu0 2
        %436 = vperm.xlu0 %435, %v281
        %v437 = vpop.permute.xlu0 %436
        %v439 = vmul.f32 %v278, %v437
        %v440 = vmul.f32 %v279, %v437
        %v441 = vmul.f32 %v280, %v437
        %442 = vset.pattern.permute.xlu0 5
        %443 = vperm.xlu0 %442, %v281
        %v444 = vpop.permute.xlu0 %443
        %v446 = vmul.f32 %v315, %v444
        %v447 = vmul.f32 %v316, %v444
        %v448 = vmul.f32 %v317, %v444
        %452 = vrot.lane.b32.xlu0 %v446, 112
        %v453 = vpop.permute.xlu0 %452
        %454 = vrot.lane.b32.xlu0 %v447, 112
        %v455 = vpop.permute.xlu0 %454
        %456 = vrot.lane.b32.xlu0 %v448, 112
        %v457 = vpop.permute.xlu0 %456
        %v458 = vsel %vm306, %v453, %v455
        %v459 = vsel %vm306, %v455, %v457
        %v463 = vadd.f32 %v439, %v453
        %v464 = vadd.f32 %v440, %v458
        %v465 = vadd.f32 %v441, %v459
        %466 = vset.pattern.permute.xlu0 8
        %467 = vperm.xlu0 %466, %v281
        %v468 = vpop.permute.xlu0 %467
        %v470 = vmul.f32 %v315, %v468
        %v471 = vmul.f32 %v316, %v468
        %v472 = vmul.f32 %v317, %v468
        %476 = vrot.lane.b32.xlu0 %v470, 96
        %v477 = vpop.permute.xlu0 %476
        %478 = vrot.lane.b32.xlu0 %v471, 96
        %v479 = vpop.permute.xlu0 %478
        %480 = vrot.lane.b32.xlu0 %v472, 96
        %v481 = vpop.permute.xlu0 %480
        %v482 = vsel %vm334, %v477, %v479
        %v483 = vsel %vm334, %v479, %v481
        %v487 = vadd.f32 %v463, %v477
        %v488 = vadd.f32 %v464, %v482
        %v489 = vadd.f32 %v465, %v483
        %s490 = scalar_lea.vmem %s3, 1
        %v491 = vld [vmem:[%s490] ss:$2 sm:$0x3]
        %v493 = vperm.slane %v491, 0
        %v494 = vperm.slane %v491, 1
        %495 = vrot.lane.b32.xlu0 %v493, 113
        %v496 = vpop.permute.xlu0 %495
        %497 = vrot.lane.b32.xlu0 %v494, 113
        %v498 = vpop.permute.xlu0 %497
        %vm499 = vcmask 924672
        %v500 = vsel %vm499, %v496, %v498
        %v504 = vmul.f32 %v487, %v496
        %v505 = vmul.f32 %v488, %v500
        %v506 = vmul.f32 %v489, %v498
        %510 = vrot.lane.b32.xlu0 %v504, 126
        %v511 = vpop.permute.xlu0 %510
        %512 = vrot.lane.b32.xlu0 %v505, 126
        %v513 = vpop.permute.xlu0 %512
        %514 = vrot.lane.b32.xlu0 %v506, 126
        %v515 = vpop.permute.xlu0 %514
        %vm516 = vcmask 1031168
        %v517 = vsel %vm516, %v511, %v513
        %v518 = vsel %vm516, %v513, %v515
        %v522 = vadd.f32 %v432, %v517
        %v523 = vadd.f32 %v433, %v518
        %v524 = vadd.f32 %v434, %v515
        %v525 = vmax.f32 %v522, 0.0
        %v526 = vmax.f32 %v523, 0.0
        %v527 = vmax.f32 %v524, 0.0
        %v528 = vmin.f32 %v525, 6.0
        %v529 = vmin.f32 %v526, 6.0
        %v530 = vmin.f32 %v527, 6.0
        %v531 = vpack.c.bf16 %v528, %v528
        %v532 = vpack.c.bf16 %v529, %v529
        %v533 = vpack.c.bf16 %v530, %v530
        %v534 = vld [vmem:[%s4] sm:$0xf]
        %v535 = vld [vmem:[%s4 + $0x4] sm:$0xf]
        %v536 = vld [vmem:[%s5] sm:$0xff]
        %v537 = vld [vmem:[%s5 + $0x8] sm:$0xff]
        %539 = vset.pattern.permute.xlu0 0
        %540 = vperm.xlu0 %539, %v536
        %v541 = vpop.permute.xlu0 %540
        %544 = vset.pattern.permute.xlu0 0
        %545 = vperm.xlu0 %544, %v537
        %v546 = vpop.permute.xlu0 %545
        %v550 = vunpack.c.l.b16 %v534
        %v551 = vunpack.c.l.b16 %v535
        %v552 = vpack.c.b16 %v551, %v550
        %556 = vrot.lane.b32.xlu0 %v531, 17
        %v557 = vpop.permute.xlu0 %556
        %558 = vrot.lane.b32.xlu0 %v532, 17
        %v559 = vpop.permute.xlu0 %558
        %560 = vrot.lane.b32.xlu0 %v533, 17
        %v561 = vpop.permute.xlu0 %560
        %vm562 = vcmask 138240
        %v563 = vsel %vm562, %v557, %v559
        %v564 = vsel %vm562, %v559, %v561
        %vm565 = vcmask 64512
        %v567 = vsel %vm565, %v552, 0
        %vm569 = vcmask 1043456
        %v571 = vsel %vm569, %v563, 0
        %v574 = vsel %vm569, %v564, 0
        %576 = vmatpush.bf16.msra.mxu0 0
        %577 = vmatpush.bf16.msra.mxu0 0
        %578 = vmatpush.bf16.msra.mxu0 0
        %579 = vmatpush.bf16.msra.mxu0 0
        %580 = vmatpush.bf16.msra.mxu0 0
        %581 = vmatpush.bf16.msra.mxu0 0
        %582 = vmatpush.bf16.msra.mxu0 0
        %583 = vmatpush.bf16.msra.mxu0 %v571
        %584 = vmatmul.bf16.gmra.mxu0 %v567
        %v585 = vpop.f32.mrf.mxu0
        %v586 = vadd.f32 %v541, %v585
        %v587 = vpop.f32.mrf.mxu0
        %v588 = vadd.f32 %v546, %v587
        %589 = vdwg.mxu0
        %590 = vmatpush.bf16.msra.mxu0 0
        %591 = vmatpush.bf16.msra.mxu0 0
        %592 = vmatpush.bf16.msra.mxu0 0
        %593 = vmatpush.bf16.msra.mxu0 0
        %594 = vmatpush.bf16.msra.mxu0 0
        %595 = vmatpush.bf16.msra.mxu0 0
        %596 = vmatpush.bf16.msra.mxu0 0
        %597 = vmatpush.bf16.msra.mxu0 %v574
        %598 = vmatmul.bf16.gmra.mxu0 %v567
        %v599 = vpop.f32.mrf.mxu0
        %v600 = vadd.f32 %v541, %v599
        %v601 = vpop.f32.mrf.mxu0
        %v602 = vadd.f32 %v546, %v601
        %603 = vdwg.mxu0
        %604 = vst [vmem:[%s269] sm:$0xff] %v586
        %605 = vst [vmem:[%s269 + $0x8] sm:$0xff] %v600
        %606 = vst [vmem:[%s269 + $0x10] sm:$0xff] %v588
        %607 = vst [vmem:[%s269 + $0x18] sm:$0xff] %v602
        %s608 = sand.u32 %s162, 1
        %s609 = scalar_lea.sflag [#allocation5], %s608
        %s610 = sand.u32 %s162, 1
        %s611 = smul.addr %s610, 32
        %s612 = scalar_lea.vmem [#allocation6], %s611
        // Predicated region
        $region49: #{tpu_custom_call.1} parent=43 // pred_check
          %p613 = pneg %p172
        $region50: #{tpu_custom_call.1} parent=43 // pred_check_branch
          %615 = sbr.rel (%p613) target = $region52
        $region51: #{tpu_custom_call.1} parent=43 // pred_region
          %617 = vsyncadd %s609, 0
          %s618 = smul.addr %s23, 4
          %s619 = smul.addr %s618, 8
          %s620 = scalar_lea.hbm %s6, %s619
          %s621 = sshll.u32 %s612, 4
          %s622 = int_to_ptr.vmem [resolvable:$true] %s621
          %s623 = sshll.u32 %s620, 4
          %s624 = int_to_ptr.hbm [resolvable:$true] %s623
          %629 = dma.vmem_to_hbm [thread:$0]  %s622, 512, %s624, %s609, 256, 256, 16
        $region52: #{tpu_custom_call.1} parent=43 // pred_fallthru
          _
      $region44: #{tpu_custom_call.1} parent=5 // pred_fallthru
        _
      %p630 = scmp.le.s32.totalorder 2, %s18
      // Predicated region
      $region53: #{tpu_custom_call.1} parent=5 // pred_check
        %p631 = pneg %p630
      $region54: #{tpu_custom_call.1} parent=5 // pred_check_branch
        %633 = sbr.rel (%p631) target = $region56
      $region55: #{tpu_custom_call.1} parent=5 // pred_region
        %s634 = ssub.s32 %s18, 2
        // Predicated region
        $region57: #{tpu_custom_call.1} parent=55 // pred_check
          %p635 = pneg %p178
        $region58: #{tpu_custom_call.1} parent=55 // pred_check_branch
          %637 = sbr.rel (%p635) target = $region60
        $region59: #{tpu_custom_call.1} parent=55 // pred_region
          %s638 = sand.u32 %s163, 1
          %s639 = scalar_lea.sflag [#allocation5], %s638
          %s640 = sand.u32 %s163, 1
          %s641 = smul.addr %s640, 32
          %s642 = scalar_lea.vmem [#allocation6], %s641
          %644 = dma.done %s639, 512
        $region60: #{tpu_custom_call.1} parent=55 // pred_fallthru
          _
      $region56: #{tpu_custom_call.1} parent=5 // pred_fallthru
        _
    $region6: #{tpu_custom_call.1} parent=1 // loop_footer
      %s22 = sadd.s32 1, %s18
    $region7: #{tpu_custom_call.1} parent=1 // loop_footer_branch
      %17 = sbr.rel target = $region3
    $region8: #{tpu_custom_call.1} parent=1 // loop_exit
      _
    %645 = vsyncpa [#allocation4], 1
    %s646 = scalar_lea.sflag [#allocation4], 1
    %647 = vsyncpa %s646, 1
    %648 = vsyncpa [#allocation5], 1
    %s649 = scalar_lea.sflag [#allocation5], 1
    %650 = vsyncpa %s649, 1

</llo_original>
